<compile_context>
chip_gen: v7x
topology: tpu7x:2x2x1
jax: 0.10.0
libtpu: 0.0.40
codegen_flags: <defaults>
</compile_context>

<pallas_src>
import jax
import jax.numpy as jnp
from jax.experimental import pallas as pl
from jax.experimental.pallas import tpu as pltpu


# ---------------------------------------------------------------------------
# Constants (module __init__-time parameters)
# ---------------------------------------------------------------------------
# kornia rgb_to_yuv coefficients (linear, no offsets).
_RGB_TO_YUV = (
    (0.299, 0.587, 0.114),
    (-0.147, -0.289, 0.436),
    (0.615, -0.515, -0.100),
)
_IDENTITY_3 = ((1.0, 0.0, 0.0), (0.0, 1.0, 0.0), (0.0, 0.0, 1.0))
# color_space == 'yuv' default weights.
_COLOR_W_YUV = (1.0, 100.0, 100.0)


def _quadratic_coeffs(a, weights):
    """M = (0.5*A)^T diag(w) (0.5*A); return (m00, m11, m22, 2*m01, 2*m02, 2*m12).

    sum_k w_k * (0.5 * A @ d)_k^2  ==  d^T M d, with the +0.5 offsets of the
    *0.5+0.5 rescale cancelling exactly in the difference d = rec - inp.
    """
    c = [[0.5 * a[i][j] for j in range(3)] for i in range(3)]
    m = [[sum(weights[k] * c[k][i] * c[k][j] for k in range(3)) for j in range(3)]
         for i in range(3)]
    return (m[0][0], m[1][1], m[2][2],
            2.0 * m[0][1], 2.0 * m[0][2], 2.0 * m[1][2])


# ---------------------------------------------------------------------------
# Pixel loss kernel (tiled, pipelined, quadratic-form math)
# ---------------------------------------------------------------------------
def _make_pixel_loss_kernel(mcoef):
    m00, m11, m22, m01x2, m02x2, m12x2 = (float(v) for v in mcoef)

    def kernel(inp_ref, rec_ref, acc_ref):
        # inp_ref, rec_ref: VMEM (n, 3, tile) blocks of the flattened images.
        # acc_ref:          VMEM (n, tile) resident partial-sum block (one per
        #                   parallel chunk), accumulated over the sequential
        #                   (arbitrary) grid axis.
        t = pl.program_id(1)

        @pl.when(t == 0)
        def _init():
            acc_ref[...] = jnp.zeros_like(acc_ref)

        # One load per ref, widened to f32 in-kernel (no wrapper-side cast ->
        # no extra HBM traffic for bf16 activations); channels sliced from the
        # loaded value instead of six strided-sublane ref slices.
        x = inp_ref[...].astype(jnp.float32)
        y = rec_ref[...].astype(jnp.float32)
        d = y - x
        dr = d[:, 0, :]
        dg = d[:, 1, :]
        db = d[:, 2, :]

        # Channel-weighted squared YUV error, already summed over channels:
        # d^T M d with M precomputed (folds rescale, color transform, weights).
        acc_ref[...] += (m00 * (dr * dr) + m11 * (dg * dg) + m22 * (db * db)
                         + m01x2 * (dr * dg) + m02x2 * (dr * db)
                         + m12x2 * (dg * db))

    return kernel


def _choose_tiling(n, hw, itemsize, max_tile, vmem_budget_bytes):
    """Pick (hw_padded, tile, num_par, num_seq).

    * hw is padded up to a multiple of 256 so the lane axis tiles cleanly and
      the tile count can always be made even -> num_par == 2 (both v7x TCs).
    * tile is sized against the sublane-PADDED VMEM footprint:
        2 inputs * 2 pipeline buffers * n * roundup(3, pack) * tile * itemsize
        + 2 * n * tile * 4   (resident f32 partial-sum block, conservatively
                              counted double-buffered)
      kept under vmem_budget_bytes (default 12 MiB: fits v5e's 16 MiB scoped
      default; v6e/v7x 32 MiB have even more headroom, and the footprint stays
      well inside v7x's 64 MiB physical VMEM per TC).
    """
    pack = 8 * max(1, 4 // max(1, itemsize))          # 8 (f32), 16 (bf16), 32 (int8)
    padded_ch = ((3 + pack - 1) // pack) * pack       # 3 channels -> pack
    per_lane_bytes = 2 * 2 * n * padded_ch * itemsize + 2 * n * 4
    budget_tile = max(128, vmem_budget_bytes // per_lane_bytes)

    hw_p = ((hw + 255) // 256) * 256
    q = hw_p // 256                                   # number of 256-lane chunks
    max_m = max(1, min(q, min(budget_tile, max_tile) // 128))
    m = 1
    for cand in range(max_m, 0, -1):                  # largest divisor of q <= max_m
        if q % cand == 0:
            m = cand
            break
    tile = 128 * m
    num_tiles = hw_p // tile                          # == 2*q/m, always even
    num_par = 2
    num_seq = num_tiles // num_par
    return hw_p, tile, num_par, num_seq


def pixel_loss_pallas(inputs_nchw, recons_nchw, color_w=_COLOR_W_YUV,
                      color_space="yuv", max_tile=16384,
                      vmem_budget_bytes=12 * 1024 * 1024):
    """(color_w * l2(yuv(rec*0.5+0.5), yuv(inp*0.5+0.5))).sum(ch).mean()."""
    n, c, h, w = inputs_nchw.shape
    assert c == 3
    hw = h * w

    itemsize = inputs_nchw.dtype.itemsize
    hw_p, tile, num_par, num_seq = _choose_tiling(
        n, hw, itemsize, max_tile, vmem_budget_bytes)

    # Free reshape; keep the original dtype (the kernel widens to f32).
    inp = inputs_nchw.reshape(n, c, hw)
    rec = recons_nchw.reshape(n, c, hw)
    if hw_p != hw:
        # Zero-pad the spatial axis: zero diff contributes 0 to the quadratic
        # form; the mean below still divides by the true n*hw.
        pad = ((0, 0), (0, 0), (0, hw_p - hw))
        inp = jnp.pad(inp, pad)
        rec = jnp.pad(rec, pad)

    a = _RGB_TO_YUV if color_space == "yuv" else _IDENTITY_3
    mcoef = _quadratic_coeffs(a, tuple(float(v) for v in color_w))
    kernel = _make_pixel_loss_kernel(mcoef)

    def in_index(p, t):
        return (0, 0, p * num_seq + t)

    partials = pl.pallas_call(
        kernel,
        out_shape=jax.ShapeDtypeStruct((num_par, n, tile), jnp.float32),
        grid=(num_par, num_seq),
        in_specs=[
            pl.BlockSpec((n, 3, tile), in_index),
            pl.BlockSpec((n, 3, tile), in_index),
        ],
        # Leading dim squeezed: each parallel chunk owns its own lane-dense
        # partial-sum block, resident across the sequential axis.
        out_specs=pl.BlockSpec((None, n, tile), lambda p, t: (p, 0, 0)),
        compiler_params=pltpu.CompilerParams(
            dimension_semantics=("parallel", "arbitrary")),
    )(inp, rec)

    # Single tiny cross-lane/sublane collapse, outside the hot loop.
    return jnp.sum(partials) / (n * hw)


# ---------------------------------------------------------------------------
# BCEWithLogits (plain jnp: tiny (N, S) work, a dedicated pallas_call would be
# dispatch-dominated; XLA fuses this for free -- per the performance review)
# ---------------------------------------------------------------------------
def bce_with_logits(logits, targets):
    x = logits.astype(jnp.float32)
    z = targets.astype(jnp.float32)
    # Stable BCEWithLogits: max(x,0) - x*z + log1p(exp(-|x|)), mean-reduced.
    return jnp.mean(jnp.maximum(x, 0.0) - x * z + jnp.log1p(jnp.exp(-jnp.abs(x))))


# ---------------------------------------------------------------------------
# ImageSecretLoss forward (pixel_loss='l2', color_space='yuv')
# ---------------------------------------------------------------------------
def image_secret_loss(inputs, reconstructions, image_w=None, secrets=None,
                      secrets_logit=None, secret_w=None,
                      pixel_w=1.5, frequency_w=1.5, perceptual_w=1.0,
                      pixel_max_tile=16384):
    pixel_loss = pixel_loss_pallas(inputs, reconstructions,
                                   color_w=_COLOR_W_YUV, color_space="yuv",
                                   max_tile=pixel_max_tile)
    rec_loss = pixel_w * pixel_loss

    if frequency_w > 0.0:
        # TODO(synk): FocalFrequencyLoss source not provided (needs 2D FFT).
        raise NotImplementedError("FocalFrequencyLoss not available; pass frequency_w=0.0")
    frequency_loss = jnp.zeros((), jnp.float32)

    if perceptual_w > 0.0:
        # TODO(synk): LPIPS needs pretrained AlexNet weights (checkpoint load).
        raise NotImplementedError("LPIPS not available; pass perceptual_w=0.0")
    perceptual_loss = jnp.zeros((), jnp.float32)

    nll_loss = rec_loss
    image_loss = nll_loss

    if secrets is None or secrets_logit is None:
        raise ValueError("secrets and secrets_logit are required (as in the PyTorch module)")
    secret_loss = bce_with_logits(secrets_logit, secrets)

    loss = image_w * image_loss + secret_w * secret_loss
    loss = loss / (image_w + secret_w)

    # jnp scalars (not float()) -> no host sync, jit-compatible.
    loss_dict = {
        "loss": loss,
        "image_loss": image_loss,
        "secret_loss": secret_loss,
        "pixel_loss": pixel_loss,
        "frequency_loss": frequency_loss,
        "perceptual_loss": perceptual_loss,
        "image_w": image_w,
        "secret_w": secret_w,
        "pixel_w": pixel_w,
        "frequency_w": frequency_w,
        "perceptual_w": perceptual_w,
    }
    return loss, loss_dict


# ---------------------------------------------------------------------------
# Pure-JAX reference (mirrors the PyTorch forward for the supported branches)
# ---------------------------------------------------------------------------
def _reference(inputs, recons, secrets, secrets_logit, image_w, secret_w, pixel_w):
    a = jnp.asarray(_RGB_TO_YUV, jnp.float32)

    def to_yuv(x):
        x = x * 0.5 + 0.5
        return jnp.einsum("yc,nchw->nyhw", a, x)

    diff2 = (to_yuv(recons) - to_yuv(inputs)) ** 2
    cw = jnp.asarray(_COLOR_W_YUV, jnp.float32).reshape(1, 3, 1, 1)
    pixel = jnp.mean(jnp.sum(cw * diff2, axis=1))
    x, z = secrets_logit, secrets
    bce = jnp.mean(jnp.maximum(x, 0.0) - x * z + jnp.log1p(jnp.exp(-jnp.abs(x))))
    image_loss = pixel_w * pixel
    return (image_w * image_loss + secret_w * bce) / (image_w + secret_w)


if __name__ == "__main__":
    key = jax.random.PRNGKey(0)
    k1, k2, k3, k4 = jax.random.split(key, 4)

    N, C, H, W = 2, 3, 32, 32
    S = 32
    inputs = jax.random.uniform(k1, (N, C, H, W), jnp.float32, -1.0, 1.0)
    recons = jax.random.uniform(k2, (N, C, H, W), jnp.float32, -1.0, 1.0)
    secrets = (jax.random.uniform(k3, (N, S)) > 0.5).astype(jnp.float32)
    secrets_logit = jax.random.normal(k4, (N, S), jnp.float32)

    ref = _reference(inputs, recons, secrets, secrets_logit,
                     image_w=1.0, secret_w=10.0, pixel_w=1.5)

    # Default tiling: hw=1024 -> tile=512, grid (2, 1).
    loss, loss_dict = image_secret_loss(
        inputs, recons,
        image_w=1.0, secrets=secrets, secrets_logit=secrets_logit,
        secret_w=10.0, pixel_w=1.5, frequency_w=0.0, perceptual_w=0.0)
    jax.block_until_ready(loss)
    assert jnp.allclose(loss, ref, rtol=1e-4, atol=1e-5), (loss, ref)

    # Small tile cap: tile=128, grid (2, 4) -> exercises the parallel partial
    # blocks AND the sequential accumulation path.
    loss2, _ = image_secret_loss(
        inputs, recons,
        image_w=1.0, secrets=secrets, secrets_logit=secrets_logit,
        secret_w=10.0, pixel_w=1.5, frequency_w=0.0, perceptual_w=0.0,
        pixel_max_tile=128)
    jax.block_until_ready(loss2)
    assert jnp.allclose(loss2, ref, rtol=1e-4, atol=1e-5), (loss2, ref)

    # Non-128-divisible spatial size: exercises the zero-padding path
    # (hw=400 -> padded to 512, tile=256, grid (2, 1)).
    H2, W2 = 20, 20
    inputs2 = jax.random.uniform(k1, (N, C, H2, W2), jnp.float32, -1.0, 1.0)
    recons2 = jax.random.uniform(k2, (N, C, H2, W2), jnp.float32, -1.0, 1.0)
    ref3 = _reference(inputs2, recons2, secrets, secrets_logit,
                      image_w=1.0, secret_w=10.0, pixel_w=1.5)
    loss3, _ = image_secret_loss(
        inputs2, recons2,
        image_w=1.0, secrets=secrets, secrets_logit=secrets_logit,
        secret_w=10.0, pixel_w=1.5, frequency_w=0.0, perceptual_w=0.0)
    jax.block_until_ready(loss3)
    assert jnp.allclose(loss3, ref3, rtol=1e-4, atol=1e-5), (loss3, ref3)

    print("KERNEL_OK")
</pallas_src>

<mosaic_0001>
module attributes {stable_mosaic.version = 11 : i64} {
  func.func @kernel(%arg0: i32, %arg1: i32, %arg2: memref<2x3x512xf32, #tpu.memory_space<vmem>>, %arg3: memref<2x3x512xf32, #tpu.memory_space<vmem>>, %arg4: memref<1x2x512xf32, #tpu.memory_space<vmem>>) attributes {dimension_semantics = [#tpu.dimension_semantics<parallel>, #tpu.dimension_semantics<arbitrary>], iteration_bounds = array<i64: 2, 1>, scalar_prefetch = 0 : i64, scratch_operands = 0 : i64, tpu.core_type = #tpu.core_type<tc>, window_params = [{transform_indices = @transform_0, window_bounds = array<i64: 2, 3, 512>}, {transform_indices = @transform_1, window_bounds = array<i64: 2, 3, 512>}, {transform_indices = @transform_2, window_bounds = array<i64: 1, 2, 512>}]} {
    %c0_i32 = arith.constant 0 : i32
    %0 = arith.cmpi eq, %arg1, %c0_i32 : i32
    %1 = arith.extui %0 : i1 to i32
    %c0_i32_0 = arith.constant 0 : i32
    %2 = arith.cmpi ne, %1, %c0_i32_0 : i32
    scf.if %2 {
      %cst_17 = arith.constant 0.000000e+00 : f32
      %41 = vector.broadcast %cst_17 : f32 to vector<2x512xf32>
      %c0_18 = arith.constant 0 : index
      %c0_19 = arith.constant 0 : index
      %c0_20 = arith.constant 0 : index
      %42 = vector.load %arg4[%c0_18, %c0_19, %c0_20] : memref<1x2x512xf32, #tpu.memory_space<vmem>>, vector<1x2x512xf32>
      %43 = vector.shape_cast %42 : vector<1x2x512xf32> to vector<2x512xf32>
      %44 = vector.shape_cast %41 : vector<2x512xf32> to vector<1x2x512xf32>
      tpu.vector_store %arg4[%c0_18, %c0_19, %c0_20], %44 {strides = array<i32>} : memref<1x2x512xf32, #tpu.memory_space<vmem>>, vector<1x2x512xf32>,
    } else {
    }
    %c0 = arith.constant 0 : index
    %c0_1 = arith.constant 0 : index
    %c0_2 = arith.constant 0 : index
    %3 = vector.load %arg2[%c0, %c0_1, %c0_2] : memref<2x3x512xf32, #tpu.memory_space<vmem>>, vector<2x3x512xf32>
    %c0_3 = arith.constant 0 : index
    %c0_4 = arith.constant 0 : index
    %c0_5 = arith.constant 0 : index
    %4 = vector.load %arg3[%c0_3, %c0_4, %c0_5] : memref<2x3x512xf32, #tpu.memory_space<vmem>>, vector<2x3x512xf32>
    %5 = arith.subf %4, %3 : vector<2x3x512xf32>
    %6 = vector.extract_strided_slice %5 {offsets = [0, 0, 0], sizes = [2, 1, 512], strides = [1, 1, 1]} : vector<2x3x512xf32> to vector<2x1x512xf32>
    %7 = vector.shape_cast %6 : vector<2x1x512xf32> to vector<2x512xf32>
    %8 = vector.extract_strided_slice %5 {offsets = [0, 1, 0], sizes = [2, 1, 512], strides = [1, 1, 1]} : vector<2x3x512xf32> to vector<2x1x512xf32>
    %9 = vector.shape_cast %8 : vector<2x1x512xf32> to vector<2x512xf32>
    %10 = vector.extract_strided_slice %5 {offsets = [0, 2, 0], sizes = [2, 1, 512], strides = [1, 1, 1]} : vector<2x3x512xf32> to vector<2x1x512xf32>
    %11 = vector.shape_cast %10 : vector<2x1x512xf32> to vector<2x512xf32>
    %c0_6 = arith.constant 0 : index
    %c0_7 = arith.constant 0 : index
    %c0_8 = arith.constant 0 : index
    %12 = vector.load %arg4[%c0_6, %c0_7, %c0_8] : memref<1x2x512xf32, #tpu.memory_space<vmem>>, vector<1x2x512xf32>
    %13 = vector.shape_cast %12 : vector<1x2x512xf32> to vector<2x512xf32>
    %14 = arith.mulf %7, %7 : vector<2x512xf32>
    %cst = arith.constant 1.001820e+01 : f32
    %15 = vector.broadcast %cst : f32 to vector<2x512xf32>
    %16 = arith.mulf %15, %14 : vector<2x512xf32>
    %17 = arith.mulf %9, %9 : vector<2x512xf32>
    %cst_9 = arith.constant 8.8047924 : f32
    %18 = vector.broadcast %cst_9 : f32 to vector<2x512xf32>
    %19 = arith.mulf %18, %17 : vector<2x512xf32>
    %20 = arith.addf %16, %19 : vector<2x512xf32>
    %21 = arith.mulf %11, %11 : vector<2x512xf32>
    %cst_10 = arith.constant 5.00564909 : f32
    %22 = vector.broadcast %cst_10 : f32 to vector<2x512xf32>
    %23 = arith.mulf %22, %21 : vector<2x512xf32>
    %24 = arith.addf %20, %23 : vector<2x512xf32>
    %25 = arith.mulf %7, %9 : vector<2x512xf32>
    %cst_11 = arith.constant -13.6243439 : f32
    %26 = vector.broadcast %cst_11 : f32 to vector<2x512xf32>
    %27 = arith.mulf %26, %25 : vector<2x512xf32>
    %28 = arith.addf %24, %27 : vector<2x512xf32>
    %29 = arith.mulf %7, %11 : vector<2x512xf32>
    %cst_12 = arith.constant -6.26255702 : f32
    %30 = vector.broadcast %cst_12 : f32 to vector<2x512xf32>
    %31 = arith.mulf %30, %29 : vector<2x512xf32>
    %32 = arith.addf %28, %31 : vector<2x512xf32>
    %33 = arith.mulf %9, %11 : vector<2x512xf32>
    %cst_13 = arith.constant -3.69174099 : f32
    %34 = vector.broadcast %cst_13 : f32 to vector<2x512xf32>
    %35 = arith.mulf %34, %33 : vector<2x512xf32>
    %36 = arith.addf %32, %35 : vector<2x512xf32>
    %37 = arith.addf %13, %36 : vector<2x512xf32>
    %c0_14 = arith.constant 0 : index
    %c0_15 = arith.constant 0 : index
    %c0_16 = arith.constant 0 : index
    %38 = vector.load %arg4[%c0_14, %c0_15, %c0_16] : memref<1x2x512xf32, #tpu.memory_space<vmem>>, vector<1x2x512xf32>
    %39 = vector.shape_cast %38 : vector<1x2x512xf32> to vector<2x512xf32>
    %40 = vector.shape_cast %37 : vector<2x512xf32> to vector<1x2x512xf32>
    tpu.vector_store %arg4[%c0_14, %c0_15, %c0_16], %40 {strides = array<i32>} : memref<1x2x512xf32, #tpu.memory_space<vmem>>, vector<1x2x512xf32>,
    return
  }
  func.func @transform_0(%arg0: i32, %arg1: i32) -> (i32, i32, i32) {
    %c1_i32 = arith.constant 1 : i32
    %0 = arith.muli %arg0, %c1_i32 : i32
    %1 = arith.addi %0, %arg1 : i32
    %c0_i32 = arith.constant 0 : i32
    %c0_i32_0 = arith.constant 0 : i32
    %c0_i32_1 = arith.constant 0 : i32
    return %c0_i32, %c0_i32_0, %1 : i32, i32, i32
  }
  func.func @transform_1(%arg0: i32, %arg1: i32) -> (i32, i32, i32) {
    %c1_i32 = arith.constant 1 : i32
    %0 = arith.muli %arg0, %c1_i32 : i32
    %1 = arith.addi %0, %arg1 : i32
    %c0_i32 = arith.constant 0 : i32
    %c0_i32_0 = arith.constant 0 : i32
    %c0_i32_1 = arith.constant 0 : i32
    return %c0_i32, %c0_i32_0, %1 : i32, i32, i32
  }
  func.func @transform_2(%arg0: i32, %arg1: i32) -> (i32, i32, i32) {
    %c0_i32 = arith.constant 0 : i32
    %c0_i32_0 = arith.constant 0 : i32
    %c0_i32_1 = arith.constant 0 : i32
    return %arg0, %c0_i32, %c0_i32_0 : i32, i32, i32
  }
}

</mosaic_0001>

<llo_original>
// kernel: tpu_custom_call.1
$region0: #{tpu_custom_call.1}
  #allocation0 [shape = 'u32[]', space=smem, size = 0x4, offset = 0x4, fixed_abs, tag = 'smem constant byte address 0x4 - core index']
  #allocation1 [shape = 'u32[144,128]{1,0:T(1,128)}', space=vmem, size = 0x12000, scoped, tag = 'internal scratch']
  %s0 = inlined_call_operand.vmem [shape: f32[2,3,1024], index: 0, kind: input, shape index: {}]
  %s1 = inlined_call_operand.vmem [shape: f32[2,3,1024], index: 1, kind: input, shape index: {}]
  %s2 = inlined_call_operand.hbm [shape: f32[2,2,512], index: 2, kind: output, shape index: {}]
  %s3 = sld [smem:[#allocation0]]
  $region91: #{tpu_custom_call.1} parent=0
    _
  %s5 = ssub.s32 1, %s3
  %s6 = scalar_select 0, %s5, %s3
  $region1: #{tpu_custom_call.1} parent=0
    #allocation2 [shape = 'u8[32768]{0}', space=vmem, size = 0x8000, scoped, tag = 'input window, operand 0']
    #allocation3 [shape = 'u8[32768]{0}', space=vmem, size = 0x8000, scoped, tag = 'input window, operand 1']
    #allocation4 [shape = 'u8[8192]{0}', space=vmem, size = 0x2000, scoped, tag = 'output window, operand 0']
    #allocation5 [shape = 's32[2]{0}', space=sflag, size = 0x8, scoped, tag = 'scoped memory for tpu_custom_call.1']
    %7 = vsyncpa [#allocation5], 0
    %s8 = scalar_lea.sflag [#allocation5], 1
    %9 = vsyncpa %s8, 0
    loop: start=0, step=1, limit=4
    $region2: #{tpu_custom_call.1} parent=1 // loop_pre_header
      _
    $region3: #{tpu_custom_call.1} parent=1 // loop_header
      %s11 = sphi 0, %s15
      %p12 = scmp.ge.s32.totalorder %s11, 4
      %s18 = sphi 0, %s30
      %s19 = sphi 0, %s26
      %s20 = sphi 0, %s18
      %s21 = sphi 0, %s19
      %s22 = sphi 0, %s20
      %s23 = sphi 0, %s21
      %s35 = sphi 0, %s37
      %s38 = sphi 0, %s35
      %s39 = sphi 0, %s38
      %s55 = sphi 0, %s39
      %s63 = sphi 0, %s65
      %s66 = sphi 0, %s63
      %s67 = sphi 0, %s66
      %s83 = sphi 0, %s67
      %s89 = sphi 0, %s91
      %s92 = sphi 0, %s89
      %s93 = sphi 0, %s92
      %s109 = sphi 0, %s93
    $region4: #{tpu_custom_call.1} parent=1 // loop_header_branch
      %14 = sbr.rel (%p12) target = $region8
    $region5: #{tpu_custom_call.1} parent=1 // loop_body
      %s16 = ssub.s32 %s11, 1
      %s17 = ssub.s32 %s11, 2
      %s24 = sadd.s32 1, %s19
      %p25 = scmp.ge.s32.totalorder %s24, 1
      %s26 = scalar_select %p25, 0, %s24
      %s27 = sadd.s32 1, %s18
      %s28 = scalar_select %p25, %s27, %s18
      %p29 = scmp.ge.s32.totalorder %s28, 2
      %s30 = scalar_select %p29, 0, %s28
      %s31 = sadd.s32 %s18, %s19
      %s32 = sadd.s32 %s30, %s26
      %s33 = ssub.s32 %s31, %s32
      %p34 = scmp.eq.s32.totalorder %s33, 0
      %s36 = sadd.s32 %s35, 1
      %s37 = scalar_select %p34, %s35, %s36
      %p40 = pneg %p34
      %p41 = scmp.eq.s32.totalorder %s11, 1
      %p42 = por %p40, %p41
      %p43 = scmp.ne.s32.totalorder %s35, %s38
      %p44 = scmp.eq.s32.totalorder %s11, 0
      %p45 = por %p43, %p44
      %p46 = scmp.ne.s32.totalorder %s35, %s38
      %p47 = scmp.eq.s32.totalorder %s16, 1
      %p48 = por %p46, %p47
      %p49 = scmp.ne.s32.totalorder %s38, %s39
      %p50 = scmp.eq.s32.totalorder %s16, 0
      %p51 = por %p49, %p50
      %p52 = scmp.ne.s32.totalorder %s38, %s39
      %p53 = scmp.eq.s32.totalorder %s17, 1
      %p54 = por %p52, %p53
      %p56 = scmp.ne.s32.totalorder %s39, %s55
      %p57 = scmp.eq.s32.totalorder %s17, 0
      %p58 = por %p56, %p57
      %s59 = sadd.s32 %s18, %s19
      %s60 = sadd.s32 %s30, %s26
      %s61 = ssub.s32 %s59, %s60
      %p62 = scmp.eq.s32.totalorder %s61, 0
      %s64 = sadd.s32 %s63, 1
      %s65 = scalar_select %p62, %s63, %s64
      %p68 = pneg %p62
      %p69 = scmp.eq.s32.totalorder %s11, 1
      %p70 = por %p68, %p69
      %p71 = scmp.ne.s32.totalorder %s63, %s66
      %p72 = scmp.eq.s32.totalorder %s11, 0
      %p73 = por %p71, %p72
      %p74 = scmp.ne.s32.totalorder %s63, %s66
      %p75 = scmp.eq.s32.totalorder %s16, 1
      %p76 = por %p74, %p75
      %p77 = scmp.ne.s32.totalorder %s66, %s67
      %p78 = scmp.eq.s32.totalorder %s16, 0
      %p79 = por %p77, %p78
      %p80 = scmp.ne.s32.totalorder %s66, %s67
      %p81 = scmp.eq.s32.totalorder %s17, 1
      %p82 = por %p80, %p81
      %p84 = scmp.ne.s32.totalorder %s67, %s83
      %p85 = scmp.eq.s32.totalorder %s17, 0
      %p86 = por %p84, %p85
      %s87 = ssub.s32 %s18, %s30
      %p88 = scmp.eq.s32.totalorder %s87, 0
      %s90 = sadd.s32 %s89, 1
      %s91 = scalar_select %p88, %s89, %s90
      %p94 = pneg %p88
      %p95 = scmp.eq.s32.totalorder %s11, 1
      %p96 = por %p94, %p95
      %p97 = scmp.ne.s32.totalorder %s89, %s92
      %p98 = scmp.eq.s32.totalorder %s11, 0
      %p99 = por %p97, %p98
      %p100 = scmp.ne.s32.totalorder %s89, %s92
      %p101 = scmp.eq.s32.totalorder %s16, 1
      %p102 = por %p100, %p101
      %p103 = scmp.ne.s32.totalorder %s92, %s93
      %p104 = scmp.eq.s32.totalorder %s16, 0
      %p105 = por %p103, %p104
      %p106 = scmp.ne.s32.totalorder %s92, %s93
      %p107 = scmp.eq.s32.totalorder %s17, 1
      %p108 = por %p106, %p107
      %p110 = scmp.ne.s32.totalorder %s93, %s109
      %p111 = scmp.eq.s32.totalorder %s17, 0
      %p112 = por %p110, %p111
      %p113 = scmp.le.s32.totalorder 1, %s11
      %p114 = scmp.lt.s32.totalorder %s11, 3
      %p115 = pnand %p113, %p114
      %p116 = pneg %p115
      // Predicated region
      $region9: #{tpu_custom_call.1} parent=5 // pred_check
        _
      $region10: #{tpu_custom_call.1} parent=5 // pred_check_branch
        %118 = sbr.rel (%p115) target = $region12
      $region11: #{tpu_custom_call.1} parent=5 // pred_region
        %s119 = ssub.s32 %s11, 1
      $region12: #{tpu_custom_call.1} parent=5 // pred_fallthru
        _
      %p120 = scmp.lt.s32.totalorder %s11, 2
      // Predicated region
      $region13: #{tpu_custom_call.1} parent=5 // pred_check
        %p121 = pneg %p120
      $region14: #{tpu_custom_call.1} parent=5 // pred_check_branch
        %123 = sbr.rel (%p121) target = $region16
      $region15: #{tpu_custom_call.1} parent=5 // pred_region
        // Predicated region
        $region17: #{tpu_custom_call.1} parent=15 // pred_check
          %p124 = pneg %p45
        $region18: #{tpu_custom_call.1} parent=15 // pred_check_branch
          %126 = sbr.rel (%p124) target = $region20
        $region19: #{tpu_custom_call.1} parent=15 // pred_region
          %s127 = sand.u32 %s35, 1
          %s128 = sand.u32 %s35, 1
          %s129 = smul.addr %s128, 32
          %s130 = scalar_lea.vmem [#allocation2], %s129
          %s131 = sadd.s32 %s18, %s19
          %s132 = smul.u32 4, %s131
          %s133 = smul.addr %s132, 4
          %s134 = scalar_lea.vmem %s0, %s133
          // Predicated region
          $region21: #{tpu_custom_call.1} parent=19 // pred_check
            _
          $region22: #{tpu_custom_call.1} parent=19 // pred_check_branch
            %136 = sbr.rel (0) target = $region24
          $region23: #{tpu_custom_call.1} parent=19 // pred_region
            // Predicated region
            $region25: #{tpu_custom_call.1} parent=23 // pred_check
              _
            $region26: #{tpu_custom_call.1} parent=23 // pred_check_branch
              %138 = sbr.rel (0) target = $region28
            $region27: #{tpu_custom_call.1} parent=23 // pred_region
              loop: start=0, step=1, limit=1
              $region29: #{tpu_custom_call.1} parent=27 // loop_pre_header
                _
              $region30: #{tpu_custom_call.1} parent=27 // loop_header
                %s140 = sphi 0, %s144
                %p141 = scmp.ge.s32.totalorder %s140, 1
                %s145 = sphi %s134, %s134
                %s146 = sphi %s130, %s130
              $region31: #{tpu_custom_call.1} parent=27 // loop_header_branch
                %143 = sbr.rel (%p141) target = $region35
              $region32: #{tpu_custom_call.1} parent=27 // loop_body
                %v147 = vld [vmem:[%s145] sm:$0xff]
                %148 = vst [vmem:[%s146] sm:$0xff] %v147
                %v149 = vld [vmem:[%s145 + $0x8] sm:$0xff]
                %150 = vst [vmem:[%s146 + $0x8] sm:$0xff] %v149
                %v151 = vld [vmem:[%s145 + $0x20] sm:$0xff]
                %152 = vst [vmem:[%s146 + $0x10] sm:$0xff] %v151
                %v153 = vld [vmem:[%s145 + $0x28] sm:$0xff]
                %154 = vst [vmem:[%s146 + $0x18] sm:$0xff] %v153
              $region33: #{tpu_custom_call.1} parent=27 // loop_footer
                %s144 = sadd.s32 1, %s140
              $region34: #{tpu_custom_call.1} parent=27 // loop_footer_branch
                %139 = sbr.rel target = $region30
              $region35: #{tpu_custom_call.1} parent=27 // loop_exit
                _
            $region28: #{tpu_custom_call.1} parent=23 // pred_fallthru
              _
            // Predicated region
            $region36: #{tpu_custom_call.1} parent=23 // pred_check
              _
            $region37: #{tpu_custom_call.1} parent=23 // pred_check_branch
              %156 = sbr.rel target = $region39
            $region38: #{tpu_custom_call.1} parent=23 // pred_region
              _
            $region39: #{tpu_custom_call.1} parent=23 // pred_fallthru
              _
          $region24: #{tpu_custom_call.1} parent=19 // pred_fallthru
            _
          %157 = vnop
        $region20: #{tpu_custom_call.1} parent=15 // pred_fallthru
          _
        // Predicated region
        $region40: #{tpu_custom_call.1} parent=15 // pred_check
          %p158 = pneg %p73
        $region41: #{tpu_custom_call.1} parent=15 // pred_check_branch
          %160 = sbr.rel (%p158) target = $region43
        $region42: #{tpu_custom_call.1} parent=15 // pred_region
          %s161 = sand.u32 %s63, 1
          %s162 = sand.u32 %s63, 1
          %s163 = smul.addr %s162, 32
          %s164 = scalar_lea.vmem [#allocation3], %s163
          %s165 = sadd.s32 %s18, %s19
          %s166 = smul.u32 4, %s165
          %s167 = smul.addr %s166, 4
          %s168 = scalar_lea.vmem %s1, %s167
          // Predicated region
          $region44: #{tpu_custom_call.1} parent=42 // pred_check
            _
          $region45: #{tpu_custom_call.1} parent=42 // pred_check_branch
            %170 = sbr.rel (0) target = $region47
          $region46: #{tpu_custom_call.1} parent=42 // pred_region
            // Predicated region
            $region48: #{tpu_custom_call.1} parent=46 // pred_check
              _
            $region49: #{tpu_custom_call.1} parent=46 // pred_check_branch
              %172 = sbr.rel (0) target = $region51
            $region50: #{tpu_custom_call.1} parent=46 // pred_region
              loop: start=0, step=1, limit=1
              $region52: #{tpu_custom_call.1} parent=50 // loop_pre_header
                _
              $region53: #{tpu_custom_call.1} parent=50 // loop_header
                %s174 = sphi 0, %s178
                %p175 = scmp.ge.s32.totalorder %s174, 1
                %s179 = sphi %s168, %s168
                %s180 = sphi %s164, %s164
              $region54: #{tpu_custom_call.1} parent=50 // loop_header_branch
                %177 = sbr.rel (%p175) target = $region58
              $region55: #{tpu_custom_call.1} parent=50 // loop_body
                %v181 = vld [vmem:[%s179] sm:$0xff]
                %182 = vst [vmem:[%s180] sm:$0xff] %v181
                %v183 = vld [vmem:[%s179 + $0x8] sm:$0xff]
                %184 = vst [vmem:[%s180 + $0x8] sm:$0xff] %v183
                %v185 = vld [vmem:[%s179 + $0x20] sm:$0xff]
                %186 = vst [vmem:[%s180 + $0x10] sm:$0xff] %v185
                %v187 = vld [vmem:[%s179 + $0x28] sm:$0xff]
                %188 = vst [vmem:[%s180 + $0x18] sm:$0xff] %v187
              $region56: #{tpu_custom_call.1} parent=50 // loop_footer
                %s178 = sadd.s32 1, %s174
              $region57: #{tpu_custom_call.1} parent=50 // loop_footer_branch
                %173 = sbr.rel target = $region53
              $region58: #{tpu_custom_call.1} parent=50 // loop_exit
                _
            $region51: #{tpu_custom_call.1} parent=46 // pred_fallthru
              _
            // Predicated region
            $region59: #{tpu_custom_call.1} parent=46 // pred_check
              _
            $region60: #{tpu_custom_call.1} parent=46 // pred_check_branch
              %190 = sbr.rel target = $region62
            $region61: #{tpu_custom_call.1} parent=46 // pred_region
              _
            $region62: #{tpu_custom_call.1} parent=46 // pred_fallthru
              _
          $region47: #{tpu_custom_call.1} parent=42 // pred_fallthru
            _
          %191 = vnop
        $region43: #{tpu_custom_call.1} parent=15 // pred_fallthru
          _
      $region16: #{tpu_custom_call.1} parent=5 // pred_fallthru
        _
      %p192 = scmp.le.s32.totalorder 1, %s11
      %p193 = scmp.lt.s32.totalorder %s11, 3
      %p194 = pnand %p192, %p193
      %p195 = pneg %p194
      // Predicated region
      $region63: #{tpu_custom_call.1} parent=5 // pred_check
        _
      $region64: #{tpu_custom_call.1} parent=5 // pred_check_branch
        %197 = sbr.rel (%p194) target = $region66
      $region65: #{tpu_custom_call.1} parent=5 // pred_region
        %s198 = ssub.s32 %s11, 1
        %s199 = sand.u32 %s38, 1
        %s200 = sand.u32 %s38, 1
        %s201 = smul.addr %s200, 32
        %s202 = scalar_lea.vmem [#allocation2], %s201
        // Predicated region
        $region67: #{tpu_custom_call.1} parent=65 // pred_check
          %p203 = pneg %p51
        $region68: #{tpu_custom_call.1} parent=65 // pred_check_branch
          %205 = sbr.rel (%p203) target = $region70
        $region69: #{tpu_custom_call.1} parent=65 // pred_region
          _
        $region70: #{tpu_custom_call.1} parent=65 // pred_fallthru
          _
        %s206 = sand.u32 %s66, 1
        %s207 = sand.u32 %s66, 1
        %s208 = smul.addr %s207, 32
        %s209 = scalar_lea.vmem [#allocation3], %s208
        // Predicated region
        $region71: #{tpu_custom_call.1} parent=65 // pred_check
          %p210 = pneg %p79
        $region72: #{tpu_custom_call.1} parent=65 // pred_check_branch
          %212 = sbr.rel (%p210) target = $region74
        $region73: #{tpu_custom_call.1} parent=65 // pred_region
          _
        $region74: #{tpu_custom_call.1} parent=65 // pred_fallthru
          _
        %s213 = sand.u32 %s38, 1
        %s214 = sand.u32 %s38, 1
        %s215 = smul.addr %s214, 32
        %s216 = scalar_lea.vmem [#allocation2], %s215
        %p217 = pneg %p51
        %p218 = pneg %p48
        %s219 = sand.u32 %s66, 1
        %s220 = sand.u32 %s66, 1
        %s221 = smul.addr %s220, 32
        %s222 = scalar_lea.vmem [#allocation3], %s221
        %p223 = pneg %p79
        %p224 = pneg %p76
        %p225 = pneg %p105
        %p226 = pneg %p102
        %s227 = sand.u32 %s92, 1
        %s228 = scalar_lea.sflag [#allocation5], %s227
        %s229 = sand.u32 %s92, 1
        %s230 = smul.addr %s229, 8
        %s231 = scalar_lea.vmem [#allocation4], %s230
        %s232 = sadd.s32 %s20, %s21
        %s233 = smul.u32 4, %s232
        %s234 = sadd.s32 %s20, %s21
        %s235 = smul.u32 4, %s234
        %p236 = scmp.eq.s32.totalorder %s21, 0
        // Predicated region
        $region75: #{tpu_custom_call.1} parent=65 // pred_check
          %p237 = pneg %p236
        $region76: #{tpu_custom_call.1} parent=65 // pred_check_branch
          %239 = sbr.rel (%p237) target = $region78
        $region77: #{tpu_custom_call.1} parent=65 // pred_region
          %240 = vst [vmem:[%s231] sm:$0xff] 0.0
        $region78: #{tpu_custom_call.1} parent=65 // pred_fallthru
          _
        %v241 = vld [vmem:[%s202] sm:$0x77]
        %v242 = vld [vmem:[%s202 + $0x8] sm:$0x77]
        %v243 = vld [vmem:[%s202 + $0x10] sm:$0x77]
        %v244 = vld [vmem:[%s202 + $0x18] sm:$0x77]
        %v245 = vld [vmem:[%s209] sm:$0x77]
        %v246 = vld [vmem:[%s209 + $0x8] sm:$0x77]
        %v247 = vld [vmem:[%s209 + $0x10] sm:$0x77]
        %v248 = vld [vmem:[%s209 + $0x18] sm:$0x77]
        %v249 = vsub.f32 %v245, %v241
        %v250 = vsub.f32 %v246, %v242
        %v251 = vsub.f32 %v247, %v243
        %v252 = vsub.f32 %v248, %v244
        %v253 = vld [vmem:[%s231] sm:$0xff]
        %v254 = vmul.f32 %v249, %v249
        %v255 = vmul.f32 %v250, %v250
        %v256 = vmul.f32 %v251, %v251
        %v257 = vmul.f32 %v252, %v252
        %v258 = vmul.f32 %v254, 10.0182
        %v259 = vmul.f32 %v255, 10.0182
        %v260 = vmul.f32 %v256, 10.0182
        %v261 = vmul.f32 %v257, 10.0182
        %v262 = vmul.f32 %v254, 8.804792
        %v263 = vmul.f32 %v255, 8.804792
        %v264 = vmul.f32 %v256, 8.804792
        %v265 = vmul.f32 %v257, 8.804792
        %v270 = vrot.slane %v262, 5
        %v271 = vrot.slane %v270, 4
        %v272 = vrot.slane %v263, 5
        %v273 = vrot.slane %v272, 4
        %v274 = vrot.slane %v264, 5
        %v275 = vrot.slane %v274, 4
        %v276 = vrot.slane %v265, 5
        %v277 = vrot.slane %v276, 4
        %v282 = vadd.f32 %v258, %v271
        %v283 = vadd.f32 %v259, %v273
        %v284 = vadd.f32 %v260, %v275
        %v285 = vadd.f32 %v261, %v277
        %v286 = vmul.f32 %v254, 5.005649
        %v287 = vmul.f32 %v255, 5.005649
        %v288 = vmul.f32 %v256, 5.005649
        %v289 = vmul.f32 %v257, 5.005649
        %v294 = vrot.slane %v286, 6
        %v295 = vrot.slane %v294, 4
        %v296 = vrot.slane %v287, 6
        %v297 = vrot.slane %v296, 4
        %v298 = vrot.slane %v288, 6
        %v299 = vrot.slane %v298, 4
        %v300 = vrot.slane %v289, 6
        %v301 = vrot.slane %v300, 4
        %v306 = vadd.f32 %v282, %v295
        %v307 = vadd.f32 %v283, %v297
        %v308 = vadd.f32 %v284, %v299
        %v309 = vadd.f32 %v285, %v301
        %v314 = vrot.slane %v249, 5
        %v315 = vrot.slane %v314, 4
        %v316 = vrot.slane %v250, 5
        %v317 = vrot.slane %v316, 4
        %v318 = vrot.slane %v251, 5
        %v319 = vrot.slane %v318, 4
        %v320 = vrot.slane %v252, 5
        %v321 = vrot.slane %v320, 4
        %v326 = vmul.f32 %v249, %v315
        %v327 = vmul.f32 %v250, %v317
        %v328 = vmul.f32 %v251, %v319
        %v329 = vmul.f32 %v252, %v321
        %v330 = vmul.f32 %v326, -13.624344
        %v331 = vmul.f32 %v327, -13.624344
        %v332 = vmul.f32 %v328, -13.624344
        %v333 = vmul.f32 %v329, -13.624344
        %v334 = vadd.f32 %v306, %v330
        %v335 = vadd.f32 %v307, %v331
        %v336 = vadd.f32 %v308, %v332
        %v337 = vadd.f32 %v309, %v333
        %v338 = vrot.slane %v249, 6
        %v339 = vrot.slane %v338, 4
        %v340 = vrot.slane %v250, 6
        %v341 = vrot.slane %v340, 4
        %v342 = vrot.slane %v251, 6
        %v343 = vrot.slane %v342, 4
        %v344 = vrot.slane %v252, 6
        %v345 = vrot.slane %v344, 4
        %v350 = vmul.f32 %v249, %v339
        %v351 = vmul.f32 %v250, %v341
        %v352 = vmul.f32 %v251, %v343
        %v353 = vmul.f32 %v252, %v345
        %v354 = vmul.f32 %v350, -6.262557
        %v355 = vmul.f32 %v351, -6.262557
        %v356 = vmul.f32 %v352, -6.262557
        %v357 = vmul.f32 %v353, -6.262557
        %v358 = vadd.f32 %v334, %v354
        %v359 = vadd.f32 %v335, %v355
        %v360 = vadd.f32 %v336, %v356
        %v361 = vadd.f32 %v337, %v357
        %v362 = vmul.f32 %v326, -3.691741
        %v363 = vmul.f32 %v327, -3.691741
        %v364 = vmul.f32 %v328, -3.691741
        %v365 = vmul.f32 %v329, -3.691741
        %v370 = vrot.slane %v362, 5
        %v371 = vrot.slane %v370, 4
        %v372 = vrot.slane %v363, 5
        %v373 = vrot.slane %v372, 4
        %v374 = vrot.slane %v364, 5
        %v375 = vrot.slane %v374, 4
        %v376 = vrot.slane %v365, 5
        %v377 = vrot.slane %v376, 4
        %v382 = vadd.f32 %v358, %v371
        %v383 = vadd.f32 %v359, %v373
        %v384 = vadd.f32 %v360, %v375
        %v385 = vadd.f32 %v361, %v377
        %v391 = vunpack.c.l.s4 1983009808
        %v392 = vunpack.c.0.s8 %v391
        %v393 = vlaneseq
        %v394 = vshrl.u32 %v393, 7
        %v395 = vsub.s32 %v392, %v394
        %v396 = vrot.slane %v382, %v395
        %v398 = vunpack.c.l.s4 1983009808
        %v399 = vunpack.c.0.s8 %v398
        %v400 = vlaneseq
        %v401 = vshrl.u32 %v400, 7
        %v402 = vsub.s32 %v399, %v401
        %v403 = vrot.slane %v383, %v402
        %v404 = vcombine.low %v396, %v403
        %v406 = vunpack.c.l.s4 1983009808
        %v407 = vunpack.c.0.s8 %v406
        %v408 = vlaneseq
        %v409 = vshrl.u32 %v408, 7
        %v410 = vsub.s32 %v407, %v409
        %v411 = vrot.slane %v384, %v410
        %v413 = vunpack.c.l.s4 1983009808
        %v414 = vunpack.c.0.s8 %v413
        %v415 = vlaneseq
        %v416 = vshrl.u32 %v415, 7
        %v417 = vsub.s32 %v414, %v416
        %v418 = vrot.slane %v385, %v417
        %v419 = vcombine.low %v411, %v418
        %vm420 = vcmask 1044484
        %v421 = vsel %vm420, %v404, %v404
        %vm422 = vcmask 1046534
        %v423 = vsel %vm422, %v404, %v421
        %v424 = vrot.slane %v419, 7
        %vm425 = vcmask 1041409
        %v426 = vsel %vm425, %v424, %v423
        %vm427 = vcmask 1043459
        %v428 = vsel %vm427, %v424, %v426
        %vm429 = vcmask 1045509
        %v430 = vsel %vm429, %v424, %v428
        %vm431 = vcmask 1047559
        %v432 = vsel %vm431, %v424, %v430
        %v434 = vadd.f32 %v253, %v432
        %435 = vst [vmem:[%s231] sm:$0xff] %v434
        %s436 = sand.u32 %s92, 1
        %s437 = scalar_lea.sflag [#allocation5], %s436
        %s438 = sand.u32 %s92, 1
        %s439 = smul.addr %s438, 8
        %s440 = scalar_lea.vmem [#allocation4], %s439
        // Predicated region
        $region79: #{tpu_custom_call.1} parent=65 // pred_check
          %p441 = pneg %p102
        $region80: #{tpu_custom_call.1} parent=65 // pred_check_branch
          %443 = sbr.rel (%p441) target = $region82
        $region81: #{tpu_custom_call.1} parent=65 // pred_region
          %s445 = ssub.s32 128, 128
          %446 = vsyncadd %s437, %s445
          %s447 = smul.addr %s20, 4
          %s448 = smul.addr %s447, 32
          %s449 = scalar_lea.hbm %s2, %s448
          %s451 = sshll.u32 %s440, 4
          %s452 = int_to_ptr.vmem [resolvable:$true] %s451
          %454 = dma.vmem_to_hbm [thread:$0]  %s452, 128, %s449, %s437
        $region82: #{tpu_custom_call.1} parent=65 // pred_fallthru
          _
      $region66: #{tpu_custom_call.1} parent=5 // pred_fallthru
        _
      %p455 = scmp.le.s32.totalorder 2, %s11
      // Predicated region
      $region83: #{tpu_custom_call.1} parent=5 // pred_check
        %p456 = pneg %p455
      $region84: #{tpu_custom_call.1} parent=5 // pred_check_branch
        %458 = sbr.rel (%p456) target = $region86
      $region85: #{tpu_custom_call.1} parent=5 // pred_region
        %s459 = ssub.s32 %s11, 2
        // Predicated region
        $region87: #{tpu_custom_call.1} parent=85 // pred_check
          %p460 = pneg %p108
        $region88: #{tpu_custom_call.1} parent=85 // pred_check_branch
          %462 = sbr.rel (%p460) target = $region90
        $region89: #{tpu_custom_call.1} parent=85 // pred_region
          %s463 = sand.u32 %s93, 1
          %s464 = scalar_lea.sflag [#allocation5], %s463
          %s465 = sand.u32 %s93, 1
          %s466 = smul.addr %s465, 8
          %s467 = scalar_lea.vmem [#allocation4], %s466
          %468 = dma.done %s464, 128
        $region90: #{tpu_custom_call.1} parent=85 // pred_fallthru
          _
      $region86: #{tpu_custom_call.1} parent=5 // pred_fallthru
        _
    $region6: #{tpu_custom_call.1} parent=1 // loop_footer
      %s15 = sadd.s32 1, %s11
    $region7: #{tpu_custom_call.1} parent=1 // loop_footer_branch
      %10 = sbr.rel target = $region3
    $region8: #{tpu_custom_call.1} parent=1 // loop_exit
      _
    %469 = vsyncpa [#allocation5], 1
    %s470 = scalar_lea.sflag [#allocation5], 1
    %471 = vsyncpa %s470, 1

</llo_original>
